<compile_context>
chip_gen: v7x
topology: tpu7x:2x2x1
jax: 0.10.0
libtpu: 0.0.40
codegen_flags: <defaults>
</compile_context>

<pallas_src>
import functools
import math

import jax
import jax.numpy as jnp
from jax.experimental import pallas as pl
from jax.experimental.pallas import tpu as pltpu


# ----------------------------------------------------------------------------
# helpers
# ----------------------------------------------------------------------------
def _round_up(x, m):
    return ((x + m - 1) // m) * m


def _pick_tile(total, max_tile, aligns):
    """Largest tile <= max_tile that divides `total` and is a multiple of one
    of `aligns` (tried in order); falls back to the full dimension."""
    if total <= max_tile:
        return total
    for align in aligns:
        t = (max_tile // align) * align
        while t >= align:
            if total % t == 0:
                return t
            t -= align
    return total


def _chip_defaults():
    """Generation-aware defaults (VMEM capacity, MXU alignment, token tile)."""
    kind = ""
    try:
        kind = jax.devices()[0].device_kind.lower()
    except Exception:
        pass
    vmem_cap = 0
    try:
        vmem_cap = int(getattr(pltpu.get_tpu_info(), "vmem_capacity_bytes", 0))
    except Exception:
        pass
    if not vmem_cap:
        # v5e / v6e: 128 MiB per TensorCore; v7x: 64 MiB. Conservative if unknown.
        vmem_cap = (128 << 20) if ("v5" in kind or "v6" in kind) else (64 << 20)
    is_v5 = "v5" in kind
    two_tc = "7" in kind                       # v7x: 2 TensorCores per chip
    aligns = (128,) if is_v5 else (256, 128)   # MXU 4x128^2 (v5e) vs 2x256^2
    tm_default = 1024 if ("v6" in kind and vmem_cap >= (128 << 20)) else 512
    return vmem_cap, aligns, tm_default, two_tc


def _token_fixed_bytes(TM, H, wbytes, obytes):
    # double-buffered x tile + double-buffered output tile + f32 accumulator
    return 2 * TM * H * wbytes + 2 * TM * H * obytes + TM * H * 4


def _fit_intermediate_tile(I_total, vmem_limit, TM, H, wbytes, obytes, aligns):
    """Pick the intermediate tile from an explicit per-step VMEM budget:
    2x(3 H*TI weight bufs) + token-resident buffers + ~2 f32 (TM, TI) temps."""
    fixed = _token_fixed_bytes(TM, H, wbytes, obytes)
    per_ti = 6 * H * wbytes + 8 * TM
    budget = int(vmem_limit * 0.8) - fixed
    ti_max = max(aligns[-1], budget // per_ti) if budget > 0 else aligns[-1]
    ti = _pick_tile(I_total, ti_max, aligns)
    step_bytes = fixed + per_ti * ti
    assert step_bytes <= vmem_limit, (
        f"intermediate tile {ti} for I={I_total} overflows the VMEM budget "
        f"({step_bytes} > {vmem_limit}); pad intermediate_size to a tile multiple")
    return ti


# ----------------------------------------------------------------------------
# Kernel 1: routed experts — average of all expert MLP outputs, accumulated
# over the (expert, intermediate-tile) grid axes in an f32 scratch.
# ----------------------------------------------------------------------------
def _routed_experts_kernel(x_ref,      # (TM, H)
                           wg_ref,     # (H, TI)  expert gate_proj (transposed)
                           wu_ref,     # (H, TI)  expert up_proj   (transposed)
                           wd_ref,     # (TI, H)  expert down_proj (transposed)
                           o_ref,      # (TM, H)
                           acc_ref,    # (TM, H) f32 scratch
                           *, inv_num_experts):
    e = pl.program_id(1)
    it = pl.program_id(2)

    @pl.when((e == 0) & (it == 0))
    def _():
        acc_ref[...] = jnp.zeros_like(acc_ref)

    x = x_ref[...]
    # silu(x@Wg) * (x@Wu), written so only one (TM, TI) f32 temporary chain is
    # live at a time (keeps the per-step VMEM footprint small at real sizes).
    h = jnp.dot(x, wg_ref[...], preferred_element_type=jnp.float32)
    h = h * jax.nn.sigmoid(h)                    # silu
    h = h * jnp.dot(x, wu_ref[...], preferred_element_type=jnp.float32)
    acc_ref[...] += jnp.dot(h.astype(wd_ref.dtype), wd_ref[...],
                            preferred_element_type=jnp.float32)

    @pl.when((e == pl.num_programs(1) - 1) & (it == pl.num_programs(2) - 1))
    def _():
        # fold the 1/num_experts scale into the single finalize step
        o_ref[...] = (acc_ref[...] * inv_num_experts).astype(o_ref.dtype)


# ----------------------------------------------------------------------------
# Kernel 2: shared expert, sigmoid-gated, fused with the final routed+shared add.
# ----------------------------------------------------------------------------
def _shared_expert_kernel(x_ref,       # (TM, H)
                          sg_ref,      # (H, TI_S)
                          su_ref,      # (H, TI_S)
                          sd_ref,      # (TI_S, H)
                          wsg_ref,     # (H, 128)  gate column padded lane-dense
                          routed_ref,  # (TM, H)   output of kernel 1
                          o_ref,       # (TM, H)
                          acc_ref):    # (TM, H) f32 scratch
    it = pl.program_id(1)

    @pl.when(it == 0)
    def _():
        acc_ref[...] = jnp.zeros_like(acc_ref)

    x = x_ref[...]
    h = jnp.dot(x, sg_ref[...], preferred_element_type=jnp.float32)
    h = h * jax.nn.sigmoid(h)                    # silu
    h = h * jnp.dot(x, su_ref[...], preferred_element_type=jnp.float32)
    acc_ref[...] += jnp.dot(h.astype(sd_ref.dtype), sd_ref[...],
                            preferred_element_type=jnp.float32)

    @pl.when(it == pl.num_programs(1) - 1)
    def _():
        # sigmoid(x @ shared_expert_gate): wsg padded to (H, 128); lane 0 real.
        gcol = jnp.dot(x, wsg_ref[...], preferred_element_type=jnp.float32)
        gate = jax.nn.sigmoid(gcol[:, 0:1])
        # fused finalize: routed-average + gate * shared, accumulated in f32
        o_ref[...] = (routed_ref[...].astype(jnp.float32)
                      + gate * acc_ref[...]).astype(o_ref.dtype)


# ----------------------------------------------------------------------------
# One-time parameter preparation (cast to compute dtype, pad the gate column).
# Avoids re-materialising a full copy of the E*H*I expert weights every call.
# ----------------------------------------------------------------------------
def prepare_qwen_moe_params(params, compute_dtype=jnp.bfloat16):
    out = dict(params)
    for k in ("expert_gate", "expert_up", "expert_down",
              "shared_gate", "shared_up", "shared_down"):
        out[k] = params[k].astype(compute_dtype)
    # pad the (H, 1) shared-expert gate column to a lane-dense (H, 128) block
    wsg = params["shared_expert_gate"].astype(compute_dtype)
    out["shared_expert_gate_padded"] = jnp.pad(wsg, ((0, 0), (0, 127)))
    out["router"] = params["router"].astype(jnp.float32)
    return out


# ----------------------------------------------------------------------------
# Wrapper
# ----------------------------------------------------------------------------
def qwen_moe_forward(x, params, *, tm=None, vmem_limit_bytes=None):
    """x: (B, S, H). params: output of prepare_qwen_moe_params.
    Returns (final_hidden_states, aux_loss)."""
    B, S, H = x.shape
    T = B * S
    out_dtype = x.dtype

    wg = params["expert_gate"]              # (E, H, I)
    wu = params["expert_up"]                # (E, H, I)
    wd = params["expert_down"]              # (E, I, H)
    sg = params["shared_gate"]              # (H, I_shared)
    su = params["shared_up"]                # (H, I_shared)
    sd = params["shared_down"]              # (I_shared, H)
    wsg_pad = params["shared_expert_gate_padded"]   # (H, 128)
    router_w = params["router"]             # (E, H)

    compute_dtype = wg.dtype
    E, _, I = wg.shape
    I_shared = sg.shape[1]

    wbytes = compute_dtype.itemsize
    obytes = out_dtype.itemsize

    vmem_cap, aligns, tm_default, two_tc = _chip_defaults()
    if vmem_limit_bytes is None:
        # ~100 MiB on 128 MiB parts (v5e/v6e); ~50 MiB on v7x (64 MiB physical).
        vmem_limit_bytes = min(100 << 20, int(vmem_cap * 0.78))

    # ---- token tiling (bf16 needs 16-row sublane packing; f32 needs 8) ------
    sub = 16 if wbytes == 2 else 8
    if tm is None:
        tm = tm_default
    TM = min(_round_up(tm, sub), _round_up(T, sub))
    # keep the token-resident buffers to <= 50% of VMEM so weight tiles stay
    # double-buffered (that is what hides the weight DMA)
    while TM > sub and _token_fixed_bytes(TM, H, wbytes, obytes) > vmem_limit_bytes // 2:
        TM = _round_up(TM // 2, sub)
    T_pad = _round_up(T, TM)
    n_tok = T_pad // TM
    # v7x: guarantee >= 2 token tiles on the "parallel" axis so both TCs run
    if two_tc and n_tok < 2 and TM >= 2 * sub:
        TM = _round_up((TM + 1) // 2, sub)
        T_pad = _round_up(T, TM)
        n_tok = T_pad // TM

    x2d = x.reshape(T, H)
    x2d_p = x2d if T_pad == T else jnp.pad(x2d, ((0, T_pad - T), (0, 0)))
    xk = x2d_p.astype(compute_dtype)

    # ---- intermediate tiling from an explicit per-step VMEM budget ----------
    TI = _fit_intermediate_tile(I, vmem_limit_bytes, TM, H, wbytes, obytes, aligns)
    TI_S = _fit_intermediate_tile(I_shared, vmem_limit_bytes, TM, H, wbytes, obytes, aligns)

    # ------------------------- routed experts kernel -------------------------
    routed_cost = pl.CostEstimate(
        flops=6 * T_pad * E * H * I,
        transcendentals=T_pad * E * I,
        # weights are re-streamed once per token tile
        bytes_accessed=n_tok * 3 * E * H * I * wbytes + T_pad * H * (wbytes + obytes),
    )
    routed2d = pl.pallas_call(
        functools.partial(_routed_experts_kernel, inv_num_experts=1.0 / E),
        out_shape=jax.ShapeDtypeStruct((T_pad, H), out_dtype),
        grid_spec=pltpu.PrefetchScalarGridSpec(
            num_scalar_prefetch=0,
            grid=(n_tok, E, I // TI),
            in_specs=[
                pl.BlockSpec((TM, H), lambda t, e, i: (t, 0)),
                pl.BlockSpec((pl.Squeezed(), H, TI), lambda t, e, i: (e, 0, i)),
                pl.BlockSpec((pl.Squeezed(), H, TI), lambda t, e, i: (e, 0, i)),
                pl.BlockSpec((pl.Squeezed(), TI, H), lambda t, e, i: (e, i, 0)),
            ],
            out_specs=pl.BlockSpec((TM, H), lambda t, e, i: (t, 0)),
            scratch_shapes=[pltpu.VMEM((TM, H), jnp.float32)],
        ),
        compiler_params=pltpu.CompilerParams(
            dimension_semantics=("parallel", "arbitrary", "arbitrary"),
            vmem_limit_bytes=vmem_limit_bytes),
        cost_estimate=routed_cost,
    )(xk, wg, wu, wd)

    # ---------------- shared expert kernel (fused final add) -----------------
    shared_cost = pl.CostEstimate(
        flops=6 * T_pad * H * I_shared + 2 * T_pad * H * 128,
        transcendentals=T_pad * (I_shared + 1),
        bytes_accessed=(n_tok * 3 * H * I_shared * wbytes
                        + T_pad * H * (wbytes + 2 * obytes)
                        + H * 128 * wbytes),
    )
    out2d_p = pl.pallas_call(
        _shared_expert_kernel,
        out_shape=jax.ShapeDtypeStruct((T_pad, H), out_dtype),
        grid_spec=pltpu.PrefetchScalarGridSpec(
            num_scalar_prefetch=0,
            grid=(n_tok, I_shared // TI_S),
            in_specs=[
                pl.BlockSpec((TM, H), lambda t, i: (t, 0)),
                pl.BlockSpec((H, TI_S), lambda t, i: (0, i)),
                pl.BlockSpec((H, TI_S), lambda t, i: (0, i)),
                pl.BlockSpec((TI_S, H), lambda t, i: (i, 0)),
                pl.BlockSpec((H, 128), lambda t, i: (0, 0)),
                pl.BlockSpec((TM, H), lambda t, i: (t, 0)),
            ],
            out_specs=pl.BlockSpec((TM, H), lambda t, i: (t, 0)),
            scratch_shapes=[pltpu.VMEM((TM, H), jnp.float32)],
        ),
        compiler_params=pltpu.CompilerParams(
            dimension_semantics=("parallel", "arbitrary"),
            vmem_limit_bytes=vmem_limit_bytes),
        cost_estimate=shared_cost,
    )(xk, sg, su, sd, wsg_pad, routed2d)

    out2d = out2d_p[:T]

    # --- router / aux-loss glue (does NOT affect the output tensor in the
    #     reference; only aux_loss is observable).  Mirrors compute_aux_loss
    #     (argmax counts), so the router top-k weights are intentionally
    #     not materialised — they are dead code in the reference forward. ---
    logits = x2d.astype(jnp.float32) @ router_w.T                    # (T, E)
    scores = jax.nn.softmax(logits, axis=-1)
    arg = jnp.argmax(scores, axis=-1)
    counts = jnp.sum(jax.nn.one_hot(arg, E, dtype=jnp.float32), axis=0)
    route_prob = jnp.mean(scores, axis=0)
    route_frac = counts / jnp.sum(counts)
    aux_loss = jnp.sum(route_prob * route_frac) * E

    return out2d.reshape(B, S, H), aux_loss


# ----------------------------------------------------------------------------
# Pure-JAX reference (mirrors the PyTorch forward exactly) for validation.
# ----------------------------------------------------------------------------
def reference_forward(x, params):
    B, S, H = x.shape
    x2d = x.reshape(-1, H)
    E = params["expert_gate"].shape[0]

    def mlp(x2, gT, uT, dT):
        return (jax.nn.silu(x2 @ gT) * (x2 @ uT)) @ dT

    shared = mlp(x2d, params["shared_gate"], params["shared_up"],
                 params["shared_down"])
    shared = shared * jax.nn.sigmoid(x2d @ params["shared_expert_gate"])

    final = jnp.zeros_like(x2d)
    for e in range(E):
        final = final + mlp(x2d, params["expert_gate"][e],
                            params["expert_up"][e],
                            params["expert_down"][e]) / E
    return (final + shared).reshape(B, S, H)


if __name__ == "__main__":
    # Small config consistent with QwenConfig structure (lane-aligned H).
    B, S = 2, 8
    H = 128          # hidden_size
    I = 256          # intermediate_size (shared expert uses the same size,
                     # since QwenMLP(config) uses config.intermediate_size)
    E = 4            # num_experts
    TOP_K = 2        # num_experts_per_tok — unused by the reference forward
                     # (routed experts are averaged, not top-k dispatched)

    key = jax.random.PRNGKey(0)
    keys = jax.random.split(key, 10)
    scale_h = 1.0 / math.sqrt(H)
    scale_i = 1.0 / math.sqrt(I)

    raw_params = {
        "expert_gate": jax.random.uniform(keys[0], (E, H, I), jnp.float32,
                                          -scale_h, scale_h),
        "expert_up": jax.random.uniform(keys[1], (E, H, I), jnp.float32,
                                        -scale_h, scale_h),
        "expert_down": jax.random.uniform(keys[2], (E, I, H), jnp.float32,
                                          -scale_i, scale_i),
        "shared_gate": jax.random.uniform(keys[3], (H, I), jnp.float32,
                                          -scale_h, scale_h),
        "shared_up": jax.random.uniform(keys[4], (H, I), jnp.float32,
                                        -scale_h, scale_h),
        "shared_down": jax.random.uniform(keys[5], (I, H), jnp.float32,
                                          -scale_i, scale_i),
        "shared_expert_gate": jax.random.uniform(keys[6], (H, 1), jnp.float32,
                                                 -scale_h, scale_h),
        "router": jax.random.uniform(keys[7], (E, H), jnp.float32,
                                     -scale_h, scale_h),
    }

    x = jax.random.normal(keys[8], (B, S, H), jnp.float32)
    ref = reference_forward(x, raw_params)

    # f32 path: strict check against the f32 reference.
    p32 = prepare_qwen_moe_params(raw_params, jnp.float32)
    out, aux_loss = qwen_moe_forward(x, p32)
    out = jax.block_until_ready(out)
    aux_loss = jax.block_until_ready(aux_loss)
    assert out.shape == (B, S, H)
    assert jnp.allclose(out, ref, atol=1e-4, rtol=1e-4), "f32 mismatch vs ref"
    assert jnp.isfinite(aux_loss)

    # bf16 production path (default of prepare_qwen_moe_params): loose check.
    pbf = prepare_qwen_moe_params(raw_params, jnp.bfloat16)
    out_bf, _ = qwen_moe_forward(x, pbf)
    out_bf = jax.block_until_ready(out_bf)
    assert jnp.all(jnp.isfinite(out_bf))
    assert jnp.allclose(out_bf, ref, atol=5e-2, rtol=5e-2), "bf16 mismatch"

    print("KERNEL_OK")
</pallas_src>

<mosaic_0001>
module attributes {stable_mosaic.version = 11 : i64} {
  func.func @_routed_experts_kernel(%arg0: i32, %arg1: i32, %arg2: i32, %arg3: memref<16x128xf32, #tpu.memory_space<vmem>>, %arg4: memref<1x128x256xf32, #tpu.memory_space<vmem>>, %arg5: memref<1x128x256xf32, #tpu.memory_space<vmem>>, %arg6: memref<1x256x128xf32, #tpu.memory_space<vmem>>, %arg7: memref<16x128xf32, #tpu.memory_space<vmem>>, %arg8: memref<16x128xf32, #tpu.memory_space<vmem>>) attributes {dimension_semantics = [#tpu.dimension_semantics<parallel>, #tpu.dimension_semantics<arbitrary>, #tpu.dimension_semantics<arbitrary>], iteration_bounds = array<i64: 1, 4, 1>, scalar_prefetch = 0 : i64, scratch_operands = 1 : i64, tpu.core_type = #tpu.core_type<tc>, window_params = [{transform_indices = @transform_0, window_bounds = array<i64: 16, 128>}, {transform_indices = @transform_1, window_bounds = array<i64: 1, 128, 256>}, {transform_indices = @transform_2, window_bounds = array<i64: 1, 128, 256>}, {transform_indices = @transform_3, window_bounds = array<i64: 1, 256, 128>}, {transform_indices = @transform_4, window_bounds = array<i64: 16, 128>}]} {
    %c0_i32 = arith.constant 0 : i32
    %0 = arith.cmpi eq, %arg1, %c0_i32 : i32
    %c0_i32_0 = arith.constant 0 : i32
    %1 = arith.cmpi eq, %arg2, %c0_i32_0 : i32
    %2 = arith.andi %0, %1 : i1
    %3 = arith.extui %2 : i1 to i32
    %c0_i32_1 = arith.constant 0 : i32
    %4 = arith.cmpi ne, %3, %c0_i32_1 : i32
    scf.if %4 {
      %cst_21 = arith.constant 0.000000e+00 : f32
      %30 = vector.broadcast %cst_21 : f32 to vector<16x128xf32>
      %c0_22 = arith.constant 0 : index
      %c0_23 = arith.constant 0 : index
      %31 = vector.load %arg8[%c0_22, %c0_23] : memref<16x128xf32, #tpu.memory_space<vmem>>, vector<16x128xf32>
      tpu.vector_store %arg8[%c0_22, %c0_23], %30 {strides = array<i32>} : memref<16x128xf32, #tpu.memory_space<vmem>>, vector<16x128xf32>,
    } else {
    }
    %c0 = arith.constant 0 : index
    %c0_2 = arith.constant 0 : index
    %5 = vector.load %arg3[%c0, %c0_2] : memref<16x128xf32, #tpu.memory_space<vmem>>, vector<16x128xf32>
    %c0_3 = arith.constant 0 : index
    %c0_4 = arith.constant 0 : index
    %c0_5 = arith.constant 0 : index
    %6 = vector.load %arg4[%c0_3, %c0_4, %c0_5] : memref<1x128x256xf32, #tpu.memory_space<vmem>>, vector<1x128x256xf32>
    %7 = vector.shape_cast %6 : vector<1x128x256xf32> to vector<128x256xf32>
    %cst = arith.constant dense<0.000000e+00> : vector<16x256xf32>
    %8 = tpu.matmul %5, %7, %cst {dimension_numbers = #tpu.dot_dimension_numbers<[1], [0], [0], [1], [0, 0, 1, 1], [], []>} : vector<16x128xf32>, vector<128x256xf32>, vector<16x256xf32> -> vector<16x256xf32>
    %9 = arith.negf %8 : vector<16x256xf32>
    %10 = math.exp %9 : vector<16x256xf32>
    %cst_6 = arith.constant 1.000000e+00 : f32
    %11 = vector.broadcast %cst_6 : f32 to vector<16x256xf32>
    %12 = arith.addf %11, %10 : vector<16x256xf32>
    %13 = arith.divf %11, %12 : vector<16x256xf32>
    %14 = arith.mulf %8, %13 : vector<16x256xf32>
    %c0_7 = arith.constant 0 : index
    %c0_8 = arith.constant 0 : index
    %c0_9 = arith.constant 0 : index
    %15 = vector.load %arg5[%c0_7, %c0_8, %c0_9] : memref<1x128x256xf32, #tpu.memory_space<vmem>>, vector<1x128x256xf32>
    %16 = vector.shape_cast %15 : vector<1x128x256xf32> to vector<128x256xf32>
    %cst_10 = arith.constant dense<0.000000e+00> : vector<16x256xf32>
    %17 = tpu.matmul %5, %16, %cst_10 {dimension_numbers = #tpu.dot_dimension_numbers<[1], [0], [0], [1], [0, 0, 1, 1], [], []>} : vector<16x128xf32>, vector<128x256xf32>, vector<16x256xf32> -> vector<16x256xf32>
    %18 = arith.mulf %14, %17 : vector<16x256xf32>
    %c0_11 = arith.constant 0 : index
    %c0_12 = arith.constant 0 : index
    %19 = vector.load %arg8[%c0_11, %c0_12] : memref<16x128xf32, #tpu.memory_space<vmem>>, vector<16x128xf32>
    %c0_13 = arith.constant 0 : index
    %c0_14 = arith.constant 0 : index
    %c0_15 = arith.constant 0 : index
    %20 = vector.load %arg6[%c0_13, %c0_14, %c0_15] : memref<1x256x128xf32, #tpu.memory_space<vmem>>, vector<1x256x128xf32>
    %21 = vector.shape_cast %20 : vector<1x256x128xf32> to vector<256x128xf32>
    %cst_16 = arith.constant dense<0.000000e+00> : vector<16x128xf32>
    %22 = tpu.matmul %18, %21, %cst_16 {dimension_numbers = #tpu.dot_dimension_numbers<[1], [0], [0], [1], [0, 0, 1, 1], [], []>} : vector<16x256xf32>, vector<256x128xf32>, vector<16x128xf32> -> vector<16x128xf32>
    %23 = arith.addf %19, %22 : vector<16x128xf32>
    %c0_17 = arith.constant 0 : index
    %c0_18 = arith.constant 0 : index
    %24 = vector.load %arg8[%c0_17, %c0_18] : memref<16x128xf32, #tpu.memory_space<vmem>>, vector<16x128xf32>
    tpu.vector_store %arg8[%c0_17, %c0_18], %23 {strides = array<i32>} : memref<16x128xf32, #tpu.memory_space<vmem>>, vector<16x128xf32>,
    %c3_i32 = arith.constant 3 : i32
    %25 = arith.cmpi eq, %arg1, %c3_i32 : i32
    %c0_i32_19 = arith.constant 0 : i32
    %26 = arith.cmpi eq, %arg2, %c0_i32_19 : i32
    %27 = arith.andi %25, %26 : i1
    %28 = arith.extui %27 : i1 to i32
    %c0_i32_20 = arith.constant 0 : i32
    %29 = arith.cmpi ne, %28, %c0_i32_20 : i32
    scf.if %29 {
      %c0_21 = arith.constant 0 : index
      %c0_22 = arith.constant 0 : index
      %30 = vector.load %arg8[%c0_21, %c0_22] : memref<16x128xf32, #tpu.memory_space<vmem>>, vector<16x128xf32>
      %cst_23 = arith.constant 2.500000e-01 : f32
      %31 = vector.broadcast %cst_23 : f32 to vector<16x128xf32>
      %32 = arith.mulf %30, %31 : vector<16x128xf32>
      %c0_24 = arith.constant 0 : index
      %c0_25 = arith.constant 0 : index
      %33 = vector.load %arg7[%c0_24, %c0_25] : memref<16x128xf32, #tpu.memory_space<vmem>>, vector<16x128xf32>
      tpu.vector_store %arg7[%c0_24, %c0_25], %32 {strides = array<i32>} : memref<16x128xf32, #tpu.memory_space<vmem>>, vector<16x128xf32>,
    } else {
    }
    return
  }
  func.func @transform_0(%arg0: i32, %arg1: i32, %arg2: i32) -> (i32, i32) {
    %c0_i32 = arith.constant 0 : i32
    %c0_i32_0 = arith.constant 0 : i32
    return %arg0, %c0_i32 : i32, i32
  }
  func.func @transform_1(%arg0: i32, %arg1: i32, %arg2: i32) -> (i32, i32, i32) {
    %c0_i32 = arith.constant 0 : i32
    %c0_i32_0 = arith.constant 0 : i32
    return %arg1, %c0_i32, %arg2 : i32, i32, i32
  }
  func.func @transform_2(%arg0: i32, %arg1: i32, %arg2: i32) -> (i32, i32, i32) {
    %c0_i32 = arith.constant 0 : i32
    %c0_i32_0 = arith.constant 0 : i32
    return %arg1, %c0_i32, %arg2 : i32, i32, i32
  }
  func.func @transform_3(%arg0: i32, %arg1: i32, %arg2: i32) -> (i32, i32, i32) {
    %c0_i32 = arith.constant 0 : i32
    %c0_i32_0 = arith.constant 0 : i32
    return %arg1, %arg2, %c0_i32 : i32, i32, i32
  }
  func.func @transform_4(%arg0: i32, %arg1: i32, %arg2: i32) -> (i32, i32) {
    %c0_i32 = arith.constant 0 : i32
    %c0_i32_0 = arith.constant 0 : i32
    return %arg0, %c0_i32 : i32, i32
  }
}

</mosaic_0001>

<llo_original>
// kernel: tpu_custom_call.1
$region0: #{tpu_custom_call.1}
  #allocation0 [shape = 'u32[]', space=smem, size = 0x4, offset = 0x4, fixed_abs, tag = 'smem constant byte address 0x4 - core index']
  #allocation1 [shape = 'u32[144,128]{1,0:T(1,128)}', space=vmem, size = 0x12000, scoped, tag = 'internal scratch']
  #allocation2 [shape = 'f32[16,128]{1,0:T(8,128)}', space=vmem, size = 0x2000, scoped, tag = 'scratch operand']
  %s0 = inlined_call_operand.hbm [shape: f32[16,128], index: 0, kind: input, shape index: {}]
  %s1 = inlined_call_operand.hbm [shape: f32[4,128,256], index: 1, kind: input, shape index: {}]
  %s2 = inlined_call_operand.hbm [shape: f32[4,128,256], index: 2, kind: input, shape index: {}]
  %s3 = inlined_call_operand.hbm [shape: f32[4,256,128], index: 3, kind: input, shape index: {}]
  %s4 = inlined_call_operand.hbm [shape: f32[16,128], index: 4, kind: output, shape index: {}]
  %s5 = sld [smem:[#allocation0]]
  $region73: #{tpu_custom_call.1} parent=0
    _
  %s7 = ssub.s32 1, %s5
  %s8 = scalar_select 0, %s7, %s5
  $region1: #{tpu_custom_call.1} parent=0
    #allocation3 [shape = 'u8[8192]{0}', space=vmem, size = 0x2000, scoped, tag = 'input window, operand 0, single buffered']
    #allocation4 [shape = 's32[2]{0}', space=sflag, size = 0x8, scoped, tag = 'scoped memory for tpu_custom_call.1']
    #allocation5 [shape = 's32[2]{0}', space=sflag, size = 0x8, scoped, tag = 'scoped memory for tpu_custom_call.1']
    #allocation6 [shape = 'u8[262144]{0}', space=vmem, size = 0x40000, scoped, tag = 'input window, operand 1']
    #allocation7 [shape = 's32[2]{0}', space=sflag, size = 0x8, scoped, tag = 'scoped memory for tpu_custom_call.1']
    #allocation8 [shape = 'u8[262144]{0}', space=vmem, size = 0x40000, scoped, tag = 'input window, operand 2']
    #allocation9 [shape = 'u8[262144]{0}', space=vmem, size = 0x40000, scoped, tag = 'input window, operand 3']
    #allocation10 [shape = 's32[2]{0}', space=sflag, size = 0x8, scoped, tag = 'scoped memory for tpu_custom_call.1']
    #allocation11 [shape = 'u8[8192]{0}', space=vmem, size = 0x2000, scoped, tag = 'output window, operand 0, single buffered']
    %9 = vsyncpa [#allocation4], 0
    %10 = vsyncpa [#allocation7], 0
    %s11 = scalar_lea.sflag [#allocation7], 1
    %12 = vsyncpa %s11, 0
    %13 = vsyncpa [#allocation10], 0
    %s14 = scalar_lea.sflag [#allocation10], 1
    %15 = vsyncpa %s14, 0
    %16 = vsyncpa [#allocation5], 0
    loop: start=0, step=1, limit=6
    $region2: #{tpu_custom_call.1} parent=1 // loop_pre_header
      _
    $region3: #{tpu_custom_call.1} parent=1 // loop_header
      %s18 = sphi 0, %s22
      %p19 = scmp.ge.s32.totalorder %s18, 6
      %s25 = sphi 0, %s44
      %s26 = sphi 0, %s40
      %s27 = sphi 0, %s36
      %s28 = sphi 0, %s25
      %s29 = sphi 0, %s26
      %s30 = sphi 0, %s27
      %s31 = sphi 0, %s28
      %s32 = sphi 0, %s29
      %s33 = sphi 0, %s30
      %s47 = sphi 0, %s49
      %s50 = sphi 0, %s47
      %s51 = sphi 0, %s50
      %s67 = sphi 0, %s51
      %s75 = sphi 0, %s77
      %s78 = sphi 0, %s75
      %s79 = sphi 0, %s78
      %s95 = sphi 0, %s79
      %s103 = sphi 0, %s105
      %s106 = sphi 0, %s103
      %s107 = sphi 0, %s106
      %s123 = sphi 0, %s107
      %s131 = sphi 0, %s133
      %s134 = sphi 0, %s131
      %s135 = sphi 0, %s134
      %s151 = sphi 0, %s135
      %s157 = sphi 0, %s159
      %s160 = sphi 0, %s157
      %s161 = sphi 0, %s160
      %s177 = sphi 0, %s161
    $region4: #{tpu_custom_call.1} parent=1 // loop_header_branch
      %21 = sbr.rel (%p19) target = $region8
    $region5: #{tpu_custom_call.1} parent=1 // loop_body
      %s23 = ssub.s32 %s18, 1
      %s24 = ssub.s32 %s18, 2
      %s34 = sadd.s32 1, %s27
      %p35 = scmp.ge.s32.totalorder %s34, 1
      %s36 = scalar_select %p35, 0, %s34
      %s37 = sadd.s32 1, %s26
      %s38 = scalar_select %p35, %s37, %s26
      %p39 = scmp.ge.s32.totalorder %s38, 4
      %s40 = scalar_select %p39, 0, %s38
      %s41 = sadd.s32 1, %s25
      %s42 = scalar_select %p39, %s41, %s25
      %p43 = scmp.ge.s32.totalorder %s42, 1
      %s44 = scalar_select %p43, 0, %s42
      %s45 = ssub.s32 %s25, %s44
      %p46 = scmp.eq.s32.totalorder %s45, 0
      %s48 = sadd.s32 %s47, 1
      %s49 = scalar_select %p46, %s47, %s48
      %p52 = pneg %p46
      %p53 = scmp.eq.s32.totalorder %s18, 3
      %p54 = por %p52, %p53
      %p55 = scmp.ne.s32.totalorder %s47, %s50
      %p56 = scmp.eq.s32.totalorder %s18, 0
      %p57 = por %p55, %p56
      %p58 = scmp.ne.s32.totalorder %s47, %s50
      %p59 = scmp.eq.s32.totalorder %s23, 3
      %p60 = por %p58, %p59
      %p61 = scmp.ne.s32.totalorder %s50, %s51
      %p62 = scmp.eq.s32.totalorder %s23, 0
      %p63 = por %p61, %p62
      %p64 = scmp.ne.s32.totalorder %s50, %s51
      %p65 = scmp.eq.s32.totalorder %s24, 3
      %p66 = por %p64, %p65
      %p68 = scmp.ne.s32.totalorder %s51, %s67
      %p69 = scmp.eq.s32.totalorder %s24, 0
      %p70 = por %p68, %p69
      %s71 = ssub.s32 %s26, %s40
      %s72 = ssub.s32 %s27, %s36
      %s73 = sor.u32 %s71, %s72
      %p74 = scmp.eq.s32.totalorder %s73, 0
      %s76 = sadd.s32 %s75, 1
      %s77 = scalar_select %p74, %s75, %s76
      %p80 = pneg %p74
      %p81 = scmp.eq.s32.totalorder %s18, 3
      %p82 = por %p80, %p81
      %p83 = scmp.ne.s32.totalorder %s75, %s78
      %p84 = scmp.eq.s32.totalorder %s18, 0
      %p85 = por %p83, %p84
      %p86 = scmp.ne.s32.totalorder %s75, %s78
      %p87 = scmp.eq.s32.totalorder %s23, 3
      %p88 = por %p86, %p87
      %p89 = scmp.ne.s32.totalorder %s78, %s79
      %p90 = scmp.eq.s32.totalorder %s23, 0
      %p91 = por %p89, %p90
      %p92 = scmp.ne.s32.totalorder %s78, %s79
      %p93 = scmp.eq.s32.totalorder %s24, 3
      %p94 = por %p92, %p93
      %p96 = scmp.ne.s32.totalorder %s79, %s95
      %p97 = scmp.eq.s32.totalorder %s24, 0
      %p98 = por %p96, %p97
      %s99 = ssub.s32 %s26, %s40
      %s100 = ssub.s32 %s27, %s36
      %s101 = sor.u32 %s99, %s100
      %p102 = scmp.eq.s32.totalorder %s101, 0
      %s104 = sadd.s32 %s103, 1
      %s105 = scalar_select %p102, %s103, %s104
      %p108 = pneg %p102
      %p109 = scmp.eq.s32.totalorder %s18, 3
      %p110 = por %p108, %p109
      %p111 = scmp.ne.s32.totalorder %s103, %s106
      %p112 = scmp.eq.s32.totalorder %s18, 0
      %p113 = por %p111, %p112
      %p114 = scmp.ne.s32.totalorder %s103, %s106
      %p115 = scmp.eq.s32.totalorder %s23, 3
      %p116 = por %p114, %p115
      %p117 = scmp.ne.s32.totalorder %s106, %s107
      %p118 = scmp.eq.s32.totalorder %s23, 0
      %p119 = por %p117, %p118
      %p120 = scmp.ne.s32.totalorder %s106, %s107
      %p121 = scmp.eq.s32.totalorder %s24, 3
      %p122 = por %p120, %p121
      %p124 = scmp.ne.s32.totalorder %s107, %s123
      %p125 = scmp.eq.s32.totalorder %s24, 0
      %p126 = por %p124, %p125
      %s127 = ssub.s32 %s26, %s40
      %s128 = ssub.s32 %s27, %s36
      %s129 = sor.u32 %s127, %s128
      %p130 = scmp.eq.s32.totalorder %s129, 0
      %s132 = sadd.s32 %s131, 1
      %s133 = scalar_select %p130, %s131, %s132
      %p136 = pneg %p130
      %p137 = scmp.eq.s32.totalorder %s18, 3
      %p138 = por %p136, %p137
      %p139 = scmp.ne.s32.totalorder %s131, %s134
      %p140 = scmp.eq.s32.totalorder %s18, 0
      %p141 = por %p139, %p140
      %p142 = scmp.ne.s32.totalorder %s131, %s134
      %p143 = scmp.eq.s32.totalorder %s23, 3
      %p144 = por %p142, %p143
      %p145 = scmp.ne.s32.totalorder %s134, %s135
      %p146 = scmp.eq.s32.totalorder %s23, 0
      %p147 = por %p145, %p146
      %p148 = scmp.ne.s32.totalorder %s134, %s135
      %p149 = scmp.eq.s32.totalorder %s24, 3
      %p150 = por %p148, %p149
      %p152 = scmp.ne.s32.totalorder %s135, %s151
      %p153 = scmp.eq.s32.totalorder %s24, 0
      %p154 = por %p152, %p153
      %s155 = ssub.s32 %s25, %s44
      %p156 = scmp.eq.s32.totalorder %s155, 0
      %s158 = sadd.s32 %s157, 1
      %s159 = scalar_select %p156, %s157, %s158
      %p162 = pneg %p156
      %p163 = scmp.eq.s32.totalorder %s18, 3
      %p164 = por %p162, %p163
      %p165 = scmp.ne.s32.totalorder %s157, %s160
      %p166 = scmp.eq.s32.totalorder %s18, 0
      %p167 = por %p165, %p166
      %p168 = scmp.ne.s32.totalorder %s157, %s160
      %p169 = scmp.eq.s32.totalorder %s23, 3
      %p170 = por %p168, %p169
      %p171 = scmp.ne.s32.totalorder %s160, %s161
      %p172 = scmp.eq.s32.totalorder %s23, 0
      %p173 = por %p171, %p172
      %p174 = scmp.ne.s32.totalorder %s160, %s161
      %p175 = scmp.eq.s32.totalorder %s24, 3
      %p176 = por %p174, %p175
      %p178 = scmp.ne.s32.totalorder %s161, %s177
      %p179 = scmp.eq.s32.totalorder %s24, 0
      %p180 = por %p178, %p179
      %p181 = scmp.le.s32.totalorder 1, %s18
      %p182 = scmp.lt.s32.totalorder %s18, 5
      %p183 = pnand %p181, %p182
      %p184 = pneg %p183
      // Predicated region
      $region9: #{tpu_custom_call.1} parent=5 // pred_check
        _
      $region10: #{tpu_custom_call.1} parent=5 // pred_check_branch
        %186 = sbr.rel (%p183) target = $region12
      $region11: #{tpu_custom_call.1} parent=5 // pred_region
        %s187 = ssub.s32 %s18, 1
        // Predicated region
        $region13: #{tpu_custom_call.1} parent=11 // pred_check
          %p188 = pneg %p63
        $region14: #{tpu_custom_call.1} parent=11 // pred_check_branch
          %190 = sbr.rel (%p188) target = $region16
        $region15: #{tpu_custom_call.1} parent=11 // pred_region
          %s191 = smul.u32 2, %s28
          %s193 = ssub.s32 256, 256
          %194 = vsyncadd [#allocation4], %s193
          %s195 = smul.addr %s191, 128
          %s196 = scalar_lea.hbm %s0, %s195
          %s197 = sshll.u32 [#allocation3], 4
          %s198 = int_to_ptr.vmem [resolvable:$true] %s197
          %203 = dma.hbm_to_vmem [thread:$0]  %s196, 256, %s198, [#allocation4], 128, 128, 8
        $region16: #{tpu_custom_call.1} parent=11 // pred_fallthru
          _
      $region12: #{tpu_custom_call.1} parent=5 // pred_fallthru
        _
      %p204 = scmp.lt.s32.totalorder %s18, 4
      // Predicated region
      $region17: #{tpu_custom_call.1} parent=5 // pred_check
        %p205 = pneg %p204
      $region18: #{tpu_custom_call.1} parent=5 // pred_check_branch
        %207 = sbr.rel (%p205) target = $region20
      $region19: #{tpu_custom_call.1} parent=5 // pred_region
        // Predicated region
        $region21: #{tpu_custom_call.1} parent=19 // pred_check
          %p208 = pneg %p85
        $region22: #{tpu_custom_call.1} parent=19 // pred_check_branch
          %210 = sbr.rel (%p208) target = $region24
        $region23: #{tpu_custom_call.1} parent=19 // pred_region
          %s211 = sand.u32 %s18, 1
          %s212 = scalar_lea.sflag [#allocation7], %s211
          %s213 = sand.u32 %s75, 1
          %s214 = smul.addr %s213, 256
          %s215 = scalar_lea.vmem [#allocation6], %s214
          %s216 = smul.u32 2, %s27
          %s218 = ssub.s32 4096, 4096
          %219 = vsyncadd %s212, %s218
          %s220 = smul.addr %s26, 32
          %s221 = sadd.s32 %s216, %s220
          %s222 = smul.addr %s221, 128
          %s223 = scalar_lea.hbm %s1, %s222
          %s224 = sshll.u32 %s215, 4
          %s225 = int_to_ptr.vmem [resolvable:$true] %s224
          %230 = dma.hbm_to_vmem [thread:$0]  %s223, 4096, %s225, %s212, 256, 256, 16
        $region24: #{tpu_custom_call.1} parent=19 // pred_fallthru
          _
        // Predicated region
        $region25: #{tpu_custom_call.1} parent=19 // pred_check
          %p231 = pneg %p113
        $region26: #{tpu_custom_call.1} parent=19 // pred_check_branch
          %233 = sbr.rel (%p231) target = $region28
        $region27: #{tpu_custom_call.1} parent=19 // pred_region
          %s234 = sand.u32 %s18, 1
          %s235 = scalar_lea.sflag [#allocation7], %s234
          %s236 = sand.u32 %s103, 1
          %s237 = smul.addr %s236, 256
          %s238 = scalar_lea.vmem [#allocation8], %s237
          %s239 = smul.u32 2, %s27
          %s241 = ssub.s32 4096, 4096
          %242 = vsyncadd %s235, %s241
          %s243 = smul.addr %s26, 32
          %s244 = sadd.s32 %s239, %s243
          %s245 = smul.addr %s244, 128
          %s246 = scalar_lea.hbm %s2, %s245
          %s247 = sshll.u32 %s238, 4
          %s248 = int_to_ptr.vmem [resolvable:$true] %s247
          %253 = dma.hbm_to_vmem [thread:$0]  %s246, 4096, %s248, %s235, 256, 256, 16
        $region28: #{tpu_custom_call.1} parent=19 // pred_fallthru
          _
        // Predicated region
        $region29: #{tpu_custom_call.1} parent=19 // pred_check
          %p254 = pneg %p141
        $region30: #{tpu_custom_call.1} parent=19 // pred_check_branch
          %256 = sbr.rel (%p254) target = $region32
        $region31: #{tpu_custom_call.1} parent=19 // pred_region
          %s257 = sand.u32 %s131, 1
          %s258 = scalar_lea.sflag [#allocation10], %s257
          %s259 = sand.u32 %s131, 1
          %s260 = smul.addr %s259, 256
          %s261 = scalar_lea.vmem [#allocation9], %s260
          %s262 = smul.u32 32, %s27
          %s264 = ssub.s32 4096, 4096
          %265 = vsyncadd %s258, %s264
          %s266 = smul.addr %s26, 32
          %s267 = sadd.s32 %s262, %s266
          %s268 = smul.addr %s267, 128
          %s269 = scalar_lea.hbm %s3, %s268
          %s270 = sshll.u32 %s261, 4
          %s271 = int_to_ptr.vmem [resolvable:$true] %s270
          %276 = dma.hbm_to_vmem [thread:$0]  %s269, 4096, %s271, %s258, 128, 128, 8
        $region32: #{tpu_custom_call.1} parent=19 // pred_fallthru
          _
      $region20: #{tpu_custom_call.1} parent=5 // pred_fallthru
        _
      %p277 = scmp.le.s32.totalorder 1, %s18
      %p278 = scmp.lt.s32.totalorder %s18, 5
      %p279 = pnand %p277, %p278
      %p280 = pneg %p279
      // Predicated region
      $region33: #{tpu_custom_call.1} parent=5 // pred_check
        _
      $region34: #{tpu_custom_call.1} parent=5 // pred_check_branch
        %282 = sbr.rel (%p279) target = $region36
      $region35: #{tpu_custom_call.1} parent=5 // pred_region
        %s283 = ssub.s32 %s18, 1
        // Predicated region
        $region37: #{tpu_custom_call.1} parent=35 // pred_check
          %p284 = pneg %p63
        $region38: #{tpu_custom_call.1} parent=35 // pred_check_branch
          %286 = sbr.rel (%p284) target = $region40
        $region39: #{tpu_custom_call.1} parent=35 // pred_region
          %287 = dma.done [#allocation4], 256
        $region40: #{tpu_custom_call.1} parent=35 // pred_fallthru
          _
        %s288 = sand.u32 %s23, 1
        %s289 = scalar_lea.sflag [#allocation7], %s288
        %s290 = sand.u32 %s78, 1
        %s291 = smul.addr %s290, 256
        %s292 = scalar_lea.vmem [#allocation6], %s291
        // Predicated region
        $region41: #{tpu_custom_call.1} parent=35 // pred_check
          %p293 = pneg %p91
        $region42: #{tpu_custom_call.1} parent=35 // pred_check_branch
          %295 = sbr.rel (%p293) target = $region44
        $region43: #{tpu_custom_call.1} parent=35 // pred_region
          %296 = dma.done %s289, 4096
        $region44: #{tpu_custom_call.1} parent=35 // pred_fallthru
          _
        %s297 = sand.u32 %s23, 1
        %s298 = scalar_lea.sflag [#allocation7], %s297
        %s299 = sand.u32 %s106, 1
        %s300 = smul.addr %s299, 256
        %s301 = scalar_lea.vmem [#allocation8], %s300
        // Predicated region
        $region45: #{tpu_custom_call.1} parent=35 // pred_check
          %p302 = pneg %p119
        $region46: #{tpu_custom_call.1} parent=35 // pred_check_branch
          %304 = sbr.rel (%p302) target = $region48
        $region47: #{tpu_custom_call.1} parent=35 // pred_region
          %305 = dma.done %s298, 4096
        $region48: #{tpu_custom_call.1} parent=35 // pred_fallthru
          _
        %s306 = sand.u32 %s134, 1
        %s307 = scalar_lea.sflag [#allocation10], %s306
        %s308 = sand.u32 %s134, 1
        %s309 = smul.addr %s308, 256
        %s310 = scalar_lea.vmem [#allocation9], %s309
        // Predicated region
        $region49: #{tpu_custom_call.1} parent=35 // pred_check
          %p311 = pneg %p147
        $region50: #{tpu_custom_call.1} parent=35 // pred_check_branch
          %313 = sbr.rel (%p311) target = $region52
        $region51: #{tpu_custom_call.1} parent=35 // pred_region
          %314 = dma.done %s307, 4096
        $region52: #{tpu_custom_call.1} parent=35 // pred_fallthru
          _
        %p315 = pneg %p63
        %p316 = pneg %p60
        %s317 = sand.u32 %s23, 1
        %s318 = scalar_lea.sflag [#allocation7], %s317
        %s319 = sand.u32 %s78, 1
        %s320 = smul.addr %s319, 256
        %s321 = scalar_lea.vmem [#allocation6], %s320
        %p322 = pneg %p91
        %p323 = pneg %p88
        %s324 = sand.u32 %s23, 1
        %s325 = scalar_lea.sflag [#allocation7], %s324
        %s326 = sand.u32 %s106, 1
        %s327 = smul.addr %s326, 256
        %s328 = scalar_lea.vmem [#allocation8], %s327
        %p329 = pneg %p119
        %p330 = pneg %p116
        %s331 = sand.u32 %s134, 1
        %s332 = scalar_lea.sflag [#allocation10], %s331
        %s333 = sand.u32 %s134, 1
        %s334 = smul.addr %s333, 256
        %s335 = scalar_lea.vmem [#allocation9], %s334
        %p336 = pneg %p147
        %p337 = pneg %p144
        %p338 = pneg %p173
        %p339 = pneg %p170
        %s340 = smul.u32 2, %s28
        %s341 = smul.u32 2, %s30
        %s342 = smul.u32 2, %s30
        %s343 = smul.u32 32, %s30
        %s344 = smul.u32 2, %s28
        %p345 = scmp.eq.s32.totalorder %s29, 0
        %p346 = scmp.eq.s32.totalorder %s30, 0
        %p347 = pnand %p345, %p346
        %p348 = pneg %p347
        // Predicated region
        $region53: #{tpu_custom_call.1} parent=35 // pred_check
          _
        $region54: #{tpu_custom_call.1} parent=35 // pred_check_branch
          %350 = sbr.rel (%p347) target = $region56
        $region55: #{tpu_custom_call.1} parent=35 // pred_region
          %351 = vst [vmem:[#allocation2] sm:$0xff] 0.0
          %352 = vst [vmem:[#allocation2 + $0x8] sm:$0xff] 0.0
        $region56: #{tpu_custom_call.1} parent=35 // pred_fallthru
          _
        %v353 = vld [vmem:[#allocation3] sm:$0xff]
        %v354 = vld [vmem:[#allocation3 + $0x8] sm:$0xff]
        %v355 = vld [vmem:[%s292] sm:$0xff]
        %v356 = vld [vmem:[%s292 + $0x8] sm:$0xff]
        %v357 = vld [vmem:[%s292 + $0x10] sm:$0xff]
        %v358 = vld [vmem:[%s292 + $0x18] sm:$0xff]
        %v359 = vld [vmem:[%s292 + $0x20] sm:$0xff]
        %v360 = vld [vmem:[%s292 + $0x28] sm:$0xff]
        %v361 = vld [vmem:[%s292 + $0x30] sm:$0xff]
        %v362 = vld [vmem:[%s292 + $0x38] sm:$0xff]
        %v363 = vld [vmem:[%s292 + $0x40] sm:$0xff]
        %v364 = vld [vmem:[%s292 + $0x48] sm:$0xff]
        %v365 = vld [vmem:[%s292 + $0x50] sm:$0xff]
        %v366 = vld [vmem:[%s292 + $0x58] sm:$0xff]
        %v367 = vld [vmem:[%s292 + $0x60] sm:$0xff]
        %v368 = vld [vmem:[%s292 + $0x68] sm:$0xff]
        %v369 = vld [vmem:[%s292 + $0x70] sm:$0xff]
        %v370 = vld [vmem:[%s292 + $0x78] sm:$0xff]
        %v371 = vld [vmem:[%s292 + $0x80] sm:$0xff]
        %v372 = vld [vmem:[%s292 + $0x88] sm:$0xff]
        %v373 = vld [vmem:[%s292 + $0x90] sm:$0xff]
        %v374 = vld [vmem:[%s292 + $0x98] sm:$0xff]
        %v375 = vld [vmem:[%s292 + $0xa0] sm:$0xff]
        %v376 = vld [vmem:[%s292 + $0xa8] sm:$0xff]
        %v377 = vld [vmem:[%s292 + $0xb0] sm:$0xff]
        %v378 = vld [vmem:[%s292 + $0xb8] sm:$0xff]
        %v379 = vld [vmem:[%s292 + $0xc0] sm:$0xff]
        %v380 = vld [vmem:[%s292 + $0xc8] sm:$0xff]
        %v381 = vld [vmem:[%s292 + $0xd0] sm:$0xff]
        %v382 = vld [vmem:[%s292 + $0xd8] sm:$0xff]
        %v383 = vld [vmem:[%s292 + $0xe0] sm:$0xff]
        %v384 = vld [vmem:[%s292 + $0xe8] sm:$0xff]
        %v385 = vld [vmem:[%s292 + $0xf0] sm:$0xff]
        %v386 = vld [vmem:[%s292 + $0xf8] sm:$0xff]
        %387 = vmatprep.subr.mxu0 %v356
        %388 = vmatpush1.msra.mxu0 %v355
        %389 = vmatprep.subr.mxu0 %v358
        %390 = vmatpush1.msra.mxu0 %v357
        %391 = vmatprep.subr.mxu0 %v360
        %392 = vmatpush1.msra.mxu0 %v359
        %393 = vmatprep.subr.mxu0 %v362
        %394 = vmatpush1.msra.mxu0 %v361
        %395 = vmatprep.subr.mxu0 %v364
        %396 = vmatpush1.msra.mxu0 %v363
        %397 = vmatprep.subr.mxu0 %v366
        %398 = vmatpush1.msra.mxu0 %v365
        %399 = vmatprep.subr.mxu0 %v368
        %400 = vmatpush1.msra.mxu0 %v367
        %401 = vmatprep.subr.mxu0 %v370
        %402 = vmatpush1.msra.mxu0 %v369
        %403 = vmatprep.subr.mxu0 %v372
        %404 = vmatpush1.msra.mxu0 %v371
        %405 = vmatprep.subr.mxu0 %v374
        %406 = vmatpush1.msra.mxu0 %v373
        %407 = vmatprep.subr.mxu0 %v376
        %408 = vmatpush1.msra.mxu0 %v375
        %409 = vmatprep.subr.mxu0 %v378
        %410 = vmatpush1.msra.mxu0 %v377
        %411 = vmatprep.subr.mxu0 %v380
        %412 = vmatpush1.msra.mxu0 %v379
        %413 = vmatprep.subr.mxu0 %v382
        %414 = vmatpush1.msra.mxu0 %v381
        %415 = vmatprep.subr.mxu0 %v384
        %416 = vmatpush1.msra.mxu0 %v383
        %417 = vmatprep.subr.mxu0 %v386
        %418 = vmatpush1.msra.mxu0 %v385
        %419 = vmatprep.subr.mxu0 0.0
        %420 = vmatpush1.msra.mxu0 0.0
        %421 = vmatprep.subr.mxu0 0.0
        %422 = vmatpush1.msra.mxu0 0.0
        %423 = vmatprep.subr.mxu0 0.0
        %424 = vmatpush1.msra.mxu0 0.0
        %425 = vmatprep.subr.mxu0 0.0
        %426 = vmatpush1.msra.mxu0 0.0
        %427 = vmatprep.subr.mxu0 0.0
        %428 = vmatpush1.msra.mxu0 0.0
        %429 = vmatprep.subr.mxu0 0.0
        %430 = vmatpush1.msra.mxu0 0.0
        %431 = vmatprep.subr.mxu0 0.0
        %432 = vmatpush1.msra.mxu0 0.0
        %433 = vmatprep.subr.mxu0 0.0
        %434 = vmatpush1.msra.mxu0 0.0
        %435 = vmatprep.subr.mxu0 0.0
        %436 = vmatpush1.msra.mxu0 0.0
        %437 = vmatprep.subr.mxu0 0.0
        %438 = vmatpush1.msra.mxu0 0.0
        %439 = vmatprep.subr.mxu0 0.0
        %440 = vmatpush1.msra.mxu0 0.0
        %441 = vmatprep.subr.mxu0 0.0
        %442 = vmatpush1.msra.mxu0 0.0
        %443 = vmatprep.subr.mxu0 0.0
        %444 = vmatpush1.msra.mxu0 0.0
        %445 = vmatprep.subr.mxu0 0.0
        %446 = vmatpush1.msra.mxu0 0.0
        %447 = vmatprep.subr.mxu0 0.0
        %448 = vmatpush1.msra.mxu0 0.0
        %449 = vmatprep.subr.mxu0 0.0
        %450 = vmatpush1.msra.mxu0 0.0
        %451 = vmatprep.mubr.f32.mxu0 0.0
        %452 = vmatmul.mubr.f32.gmra.mrb[0].mxu0 %v353
        %v453 = vpop.f32.mrb[0].mxu0
        %v454 = vadd.f32 0.0, %v453
        %v455 = vpop.f32.mrb[0].mxu0
        %v456 = vadd.f32 0.0, %v455
        %457 = vmatprep.mubr.f32.mxu0 0.0
        %458 = vmatmul.mubr.f32.gmra.mrb[0].mxu0 %v354
        %v459 = vpop.f32.mrb[0].mxu0
        %v460 = vadd.f32 0.0, %v459
        %v461 = vpop.f32.mrb[0].mxu0
        %v462 = vadd.f32 0.0, %v461
        %463 = vdwg.mxu0
        %v464 = vxor.u32 %v454, 2147483648
        %v465 = vxor.u32 %v456, 2147483648
        %v466 = vxor.u32 %v460, 2147483648
        %v467 = vxor.u32 %v462, 2147483648
        %v468 = vmul.f32 %v464, 1.442695
        %v469 = vpow.pop %v468
        %v470 = vmul.f32 %v465, 1.442695
        %v471 = vpow.pop %v470
        %v472 = vmul.f32 %v466, 1.442695
        %v473 = vpow.pop %v472
        %v474 = vmul.f32 %v467, 1.442695
        %v475 = vpow.pop %v474
        %v476 = vadd.f32 %v469, 1.0
        %v477 = vadd.f32 %v471, 1.0
        %v478 = vadd.f32 %v473, 1.0
        %v479 = vadd.f32 %v475, 1.0
        %v480 = vrcp.pop %v476
        %v481 = vmul.f32 1.0, %v480
        %v482 = vrcp.pop %v477
        %v483 = vmul.f32 1.0, %v482
        %v484 = vrcp.pop %v478
        %v485 = vmul.f32 1.0, %v484
        %v486 = vrcp.pop %v479
        %v487 = vmul.f32 1.0, %v486
        %v488 = vmul.f32 %v454, %v481
        %v489 = vmul.f32 %v456, %v483
        %v490 = vmul.f32 %v460, %v485
        %v491 = vmul.f32 %v462, %v487
        %v492 = vld [vmem:[%s301] sm:$0xff]
        %v493 = vld [vmem:[%s301 + $0x8] sm:$0xff]
        %v494 = vld [vmem:[%s301 + $0x10] sm:$0xff]
        %v495 = vld [vmem:[%s301 + $0x18] sm:$0xff]
        %v496 = vld [vmem:[%s301 + $0x20] sm:$0xff]
        %v497 = vld [vmem:[%s301 + $0x28] sm:$0xff]
        %v498 = vld [vmem:[%s301 + $0x30] sm:$0xff]
        %v499 = vld [vmem:[%s301 + $0x38] sm:$0xff]
        %v500 = vld [vmem:[%s301 + $0x40] sm:$0xff]
        %v501 = vld [vmem:[%s301 + $0x48] sm:$0xff]
        %v502 = vld [vmem:[%s301 + $0x50] sm:$0xff]
        %v503 = vld [vmem:[%s301 + $0x58] sm:$0xff]
        %v504 = vld [vmem:[%s301 + $0x60] sm:$0xff]
        %v505 = vld [vmem:[%s301 + $0x68] sm:$0xff]
        %v506 = vld [vmem:[%s301 + $0x70] sm:$0xff]
        %v507 = vld [vmem:[%s301 + $0x78] sm:$0xff]
        %v508 = vld [vmem:[%s301 + $0x80] sm:$0xff]
        %v509 = vld [vmem:[%s301 + $0x88] sm:$0xff]
        %v510 = vld [vmem:[%s301 + $0x90] sm:$0xff]
        %v511 = vld [vmem:[%s301 + $0x98] sm:$0xff]
        %v512 = vld [vmem:[%s301 + $0xa0] sm:$0xff]
        %v513 = vld [vmem:[%s301 + $0xa8] sm:$0xff]
        %v514 = vld [vmem:[%s301 + $0xb0] sm:$0xff]
        %v515 = vld [vmem:[%s301 + $0xb8] sm:$0xff]
        %v516 = vld [vmem:[%s301 + $0xc0] sm:$0xff]
        %v517 = vld [vmem:[%s301 + $0xc8] sm:$0xff]
        %v518 = vld [vmem:[%s301 + $0xd0] sm:$0xff]
        %v519 = vld [vmem:[%s301 + $0xd8] sm:$0xff]
        %v520 = vld [vmem:[%s301 + $0xe0] sm:$0xff]
        %v521 = vld [vmem:[%s301 + $0xe8] sm:$0xff]
        %v522 = vld [vmem:[%s301 + $0xf0] sm:$0xff]
        %v523 = vld [vmem:[%s301 + $0xf8] sm:$0xff]
        %524 = vmatprep.subr.mxu0 %v493
        %525 = vmatpush1.msra.mxu0 %v492
        %526 = vmatprep.subr.mxu0 %v495
        %527 = vmatpush1.msra.mxu0 %v494
        %528 = vmatprep.subr.mxu0 %v497
        %529 = vmatpush1.msra.mxu0 %v496
        %530 = vmatprep.subr.mxu0 %v499
        %531 = vmatpush1.msra.mxu0 %v498
        %532 = vmatprep.subr.mxu0 %v501
        %533 = vmatpush1.msra.mxu0 %v500
        %534 = vmatprep.subr.mxu0 %v503
        %535 = vmatpush1.msra.mxu0 %v502
        %536 = vmatprep.subr.mxu0 %v505
        %537 = vmatpush1.msra.mxu0 %v504
        %538 = vmatprep.subr.mxu0 %v507
        %539 = vmatpush1.msra.mxu0 %v506
        %540 = vmatprep.subr.mxu0 %v509
        %541 = vmatpush1.msra.mxu0 %v508
        %542 = vmatprep.subr.mxu0 %v511
        %543 = vmatpush1.msra.mxu0 %v510
        %544 = vmatprep.subr.mxu0 %v513
        %545 = vmatpush1.msra.mxu0 %v512
        %546 = vmatprep.subr.mxu0 %v515
        %547 = vmatpush1.msra.mxu0 %v514
        %548 = vmatprep.subr.mxu0 %v517
        %549 = vmatpush1.msra.mxu0 %v516
        %550 = vmatprep.subr.mxu0 %v519
        %551 = vmatpush1.msra.mxu0 %v518
        %552 = vmatprep.subr.mxu0 %v521
        %553 = vmatpush1.msra.mxu0 %v520
        %554 = vmatprep.subr.mxu0 %v523
        %555 = vmatpush1.msra.mxu0 %v522
        %556 = vmatprep.subr.mxu0 0.0
        %557 = vmatpush1.msra.mxu0 0.0
        %558 = vmatprep.subr.mxu0 0.0
        %559 = vmatpush1.msra.mxu0 0.0
        %560 = vmatprep.subr.mxu0 0.0
        %561 = vmatpush1.msra.mxu0 0.0
        %562 = vmatprep.subr.mxu0 0.0
        %563 = vmatpush1.msra.mxu0 0.0
        %564 = vmatprep.subr.mxu0 0.0
        %565 = vmatpush1.msra.mxu0 0.0
        %566 = vmatprep.subr.mxu0 0.0
        %567 = vmatpush1.msra.mxu0 0.0
        %568 = vmatprep.subr.mxu0 0.0
        %569 = vmatpush1.msra.mxu0 0.0
        %570 = vmatprep.subr.mxu0 0.0
        %571 = vmatpush1.msra.mxu0 0.0
        %572 = vmatprep.subr.mxu0 0.0
        %573 = vmatpush1.msra.mxu0 0.0
        %574 = vmatprep.subr.mxu0 0.0
        %575 = vmatpush1.msra.mxu0 0.0
        %576 = vmatprep.subr.mxu0 0.0
        %577 = vmatpush1.msra.mxu0 0.0
        %578 = vmatprep.subr.mxu0 0.0
        %579 = vmatpush1.msra.mxu0 0.0
        %580 = vmatprep.subr.mxu0 0.0
        %581 = vmatpush1.msra.mxu0 0.0
        %582 = vmatprep.subr.mxu0 0.0
        %583 = vmatpush1.msra.mxu0 0.0
        %584 = vmatprep.subr.mxu0 0.0
        %585 = vmatpush1.msra.mxu0 0.0
        %586 = vmatprep.subr.mxu0 0.0
        %587 = vmatpush1.msra.mxu0 0.0
        %588 = vmatprep.mubr.f32.mxu0 0.0
        %589 = vmatmul.mubr.f32.gmra.mrb[0].mxu0 %v353
        %v590 = vpop.f32.mrb[0].mxu0
        %v591 = vadd.f32 0.0, %v590
        %v592 = vpop.f32.mrb[0].mxu0
        %v593 = vadd.f32 0.0, %v592
        %594 = vmatprep.mubr.f32.mxu0 0.0
        %595 = vmatmul.mubr.f32.gmra.mrb[0].mxu0 %v354
        %v596 = vpop.f32.mrb[0].mxu0
        %v597 = vadd.f32 0.0, %v596
        %v598 = vpop.f32.mrb[0].mxu0
        %v599 = vadd.f32 0.0, %v598
        %600 = vdwg.mxu0
        %v601 = vmul.f32 %v488, %v591
        %v602 = vmul.f32 %v489, %v593
        %v603 = vmul.f32 %v490, %v597
        %v604 = vmul.f32 %v491, %v599
        %v605 = vld [vmem:[#allocation2] sm:$0xff]
        %v606 = vld [vmem:[#allocation2 + $0x8] sm:$0xff]
        %v607 = vld [vmem:[%s310] sm:$0xff]
        %v608 = vld [vmem:[%s310 + $0x8] sm:$0xff]
        %v609 = vld [vmem:[%s310 + $0x10] sm:$0xff]
        %v610 = vld [vmem:[%s310 + $0x18] sm:$0xff]
        %v611 = vld [vmem:[%s310 + $0x20] sm:$0xff]
        %v612 = vld [vmem:[%s310 + $0x28] sm:$0xff]
        %v613 = vld [vmem:[%s310 + $0x30] sm:$0xff]
        %v614 = vld [vmem:[%s310 + $0x38] sm:$0xff]
        %v615 = vld [vmem:[%s310 + $0x40] sm:$0xff]
        %v616 = vld [vmem:[%s310 + $0x48] sm:$0xff]
        %v617 = vld [vmem:[%s310 + $0x50] sm:$0xff]
        %v618 = vld [vmem:[%s310 + $0x58] sm:$0xff]
        %v619 = vld [vmem:[%s310 + $0x60] sm:$0xff]
        %v620 = vld [vmem:[%s310 + $0x68] sm:$0xff]
        %v621 = vld [vmem:[%s310 + $0x70] sm:$0xff]
        %v622 = vld [vmem:[%s310 + $0x78] sm:$0xff]
        %v623 = vld [vmem:[%s310 + $0x80] sm:$0xff]
        %v624 = vld [vmem:[%s310 + $0x88] sm:$0xff]
        %v625 = vld [vmem:[%s310 + $0x90] sm:$0xff]
        %v626 = vld [vmem:[%s310 + $0x98] sm:$0xff]
        %v627 = vld [vmem:[%s310 + $0xa0] sm:$0xff]
        %v628 = vld [vmem:[%s310 + $0xa8] sm:$0xff]
        %v629 = vld [vmem:[%s310 + $0xb0] sm:$0xff]
        %v630 = vld [vmem:[%s310 + $0xb8] sm:$0xff]
        %v631 = vld [vmem:[%s310 + $0xc0] sm:$0xff]
        %v632 = vld [vmem:[%s310 + $0xc8] sm:$0xff]
        %v633 = vld [vmem:[%s310 + $0xd0] sm:$0xff]
        %v634 = vld [vmem:[%s310 + $0xd8] sm:$0xff]
        %v635 = vld [vmem:[%s310 + $0xe0] sm:$0xff]
        %v636 = vld [vmem:[%s310 + $0xe8] sm:$0xff]
        %v637 = vld [vmem:[%s310 + $0xf0] sm:$0xff]
        %v638 = vld [vmem:[%s310 + $0xf8] sm:$0xff]
        %639 = vmatprep.subr.mxu0 0.0
        %640 = vmatpush1.msra.mxu0 %v607
        %641 = vmatprep.subr.mxu0 0.0
        %642 = vmatpush1.msra.mxu0 %v608
        %643 = vmatprep.subr.mxu0 0.0
        %644 = vmatpush1.msra.mxu0 %v609
        %645 = vmatprep.subr.mxu0 0.0
        %646 = vmatpush1.msra.mxu0 %v610
        %647 = vmatprep.subr.mxu0 0.0
        %648 = vmatpush1.msra.mxu0 %v611
        %649 = vmatprep.subr.mxu0 0.0
        %650 = vmatpush1.msra.mxu0 %v612
        %651 = vmatprep.subr.mxu0 0.0
        %652 = vmatpush1.msra.mxu0 %v613
        %653 = vmatprep.subr.mxu0 0.0
        %654 = vmatpush1.msra.mxu0 %v614
        %655 = vmatprep.subr.mxu0 0.0
        %656 = vmatpush1.msra.mxu0 %v615
        %657 = vmatprep.subr.mxu0 0.0
        %658 = vmatpush1.msra.mxu0 %v616
        %659 = vmatprep.subr.mxu0 0.0
        %660 = vmatpush1.msra.mxu0 %v617
        %661 = vmatprep.subr.mxu0 0.0
        %662 = vmatpush1.msra.mxu0 %v618
        %663 = vmatprep.subr.mxu0 0.0
        %664 = vmatpush1.msra.mxu0 %v619
        %665 = vmatprep.subr.mxu0 0.0
        %666 = vmatpush1.msra.mxu0 %v620
        %667 = vmatprep.subr.mxu0 0.0
        %668 = vmatpush1.msra.mxu0 %v621
        %669 = vmatprep.subr.mxu0 0.0
        %670 = vmatpush1.msra.mxu0 %v622
        %671 = vmatprep.subr.mxu0 0.0
        %672 = vmatpush1.msra.mxu0 %v623
        %673 = vmatprep.subr.mxu0 0.0
        %674 = vmatpush1.msra.mxu0 %v624
        %675 = vmatprep.subr.mxu0 0.0
        %676 = vmatpush1.msra.mxu0 %v625
        %677 = vmatprep.subr.mxu0 0.0
        %678 = vmatpush1.msra.mxu0 %v626
        %679 = vmatprep.subr.mxu0 0.0
        %680 = vmatpush1.msra.mxu0 %v627
        %681 = vmatprep.subr.mxu0 0.0
        %682 = vmatpush1.msra.mxu0 %v628
        %683 = vmatprep.subr.mxu0 0.0
        %684 = vmatpush1.msra.mxu0 %v629
        %685 = vmatprep.subr.mxu0 0.0
        %686 = vmatpush1.msra.mxu0 %v630
        %687 = vmatprep.subr.mxu0 0.0
        %688 = vmatpush1.msra.mxu0 %v631
        %689 = vmatprep.subr.mxu0 0.0
        %690 = vmatpush1.msra.mxu0 %v632
        %691 = vmatprep.subr.mxu0 0.0
        %692 = vmatpush1.msra.mxu0 %v633
        %693 = vmatprep.subr.mxu0 0.0
        %694 = vmatpush1.msra.mxu0 %v634
        %695 = vmatprep.subr.mxu0 0.0
        %696 = vmatpush1.msra.mxu0 %v635
        %697 = vmatprep.subr.mxu0 0.0
        %698 = vmatpush1.msra.mxu0 %v636
        %699 = vmatprep.subr.mxu0 0.0
        %700 = vmatpush1.msra.mxu0 %v637
        %701 = vmatprep.subr.mxu0 0.0
        %702 = vmatpush1.msra.mxu0 %v638
        %703 = vmatprep.mubr.f32.mxu0 %v602
        %704 = vmatmul.mubr.f32.gmra.mrb[0].mxu0 %v601
        %v705 = vpop.f32.mrb[0].mxu0
        %v706 = vadd.f32 0.0, %v705
        %v707 = vpop.f32.mrb[0].mxu0
        %708 = vmatprep.mubr.f32.mxu0 %v604
        %709 = vmatmul.mubr.f32.gmra.mrb[0].mxu0 %v603
        %v710 = vpop.f32.mrb[0].mxu0
        %v711 = vadd.f32 0.0, %v710
        %v712 = vpop.f32.mrb[0].mxu0
        %713 = vdwg.mxu0
        %v714 = vadd.f32 %v605, %v706
        %v715 = vadd.f32 %v606, %v711
        %716 = vst [vmem:[#allocation2] sm:$0xff] %v714
        %717 = vst [vmem:[#allocation2 + $0x8] sm:$0xff] %v715
        %p718 = scmp.eq.s32.totalorder %s29, 3
        %p719 = pnand %p718, %p346
        %p720 = pneg %p719
        // Predicated region
        $region57: #{tpu_custom_call.1} parent=35 // pred_check
          _
        $region58: #{tpu_custom_call.1} parent=35 // pred_check_branch
          %722 = sbr.rel (%p719) target = $region60
        $region59: #{tpu_custom_call.1} parent=35 // pred_region
          %v723 = vld [vmem:[#allocation2] sm:$0xff]
          %v724 = vld [vmem:[#allocation2 + $0x8] sm:$0xff]
          %v725 = vmul.f32 %v723, 0.25
          %v726 = vmul.f32 %v724, 0.25
          %727 = vst [vmem:[#allocation11] sm:$0xff] %v725
          %728 = vst [vmem:[#allocation11 + $0x8] sm:$0xff] %v726
        $region60: #{tpu_custom_call.1} parent=35 // pred_fallthru
          _
        // Predicated region
        $region61: #{tpu_custom_call.1} parent=35 // pred_check
          %p729 = pneg %p170
        $region62: #{tpu_custom_call.1} parent=35 // pred_check_branch
          %731 = sbr.rel (%p729) target = $region64
        $region63: #{tpu_custom_call.1} parent=35 // pred_region
          %s732 = smul.u32 2, %s28
          %s734 = ssub.s32 256, 256
          %735 = vsyncadd [#allocation5], %s734
          %s736 = smul.addr %s732, 128
          %s737 = scalar_lea.hbm %s4, %s736
          %s738 = sshll.u32 [#allocation11], 4
          %s739 = int_to_ptr.vmem [resolvable:$true] %s738
          %744 = dma.vmem_to_hbm [thread:$0]  %s739, 256, %s737, [#allocation5], 128, 128, 8
        $region64: #{tpu_custom_call.1} parent=35 // pred_fallthru
          _
        // Predicated region
        $region65: #{tpu_custom_call.1} parent=35 // pred_check
          %p745 = pneg %p170
        $region66: #{tpu_custom_call.1} parent=35 // pred_check_branch
          %747 = sbr.rel (%p745) target = $region68
        $region67: #{tpu_custom_call.1} parent=35 // pred_region
          %748 = dma.done [#allocation5], 256
        $region68: #{tpu_custom_call.1} parent=35 // pred_fallthru
          _
      $region36: #{tpu_custom_call.1} parent=5 // pred_fallthru
        _
      %p749 = scmp.le.s32.totalorder 2, %s18
      // Predicated region
      $region69: #{tpu_custom_call.1} parent=5 // pred_check
        %p750 = pneg %p749
      $region70: #{tpu_custom_call.1} parent=5 // pred_check_branch
        %752 = sbr.rel (%p750) target = $region72
      $region71: #{tpu_custom_call.1} parent=5 // pred_region
        %s753 = ssub.s32 %s18, 2
      $region72: #{tpu_custom_call.1} parent=5 // pred_fallthru
        _
    $region6: #{tpu_custom_call.1} parent=1 // loop_footer
      %s22 = sadd.s32 1, %s18
    $region7: #{tpu_custom_call.1} parent=1 // loop_footer_branch
      %17 = sbr.rel target = $region3
    $region8: #{tpu_custom_call.1} parent=1 // loop_exit
      _
    %754 = vsyncpa [#allocation4], 1
    %s755 = scalar_lea.sflag [#allocation4], 1
    %756 = vsyncpa %s755, 1
    %757 = vsyncpa [#allocation7], 1
    %s758 = scalar_lea.sflag [#allocation7], 1
    %759 = vsyncpa %s758, 1
    %760 = vsyncpa [#allocation10], 1
    %s761 = scalar_lea.sflag [#allocation10], 1
    %762 = vsyncpa %s761, 1
    %763 = vsyncpa [#allocation5], 1
    %s764 = scalar_lea.sflag [#allocation5], 1
    %765 = vsyncpa %s764, 1

</llo_original>
